<compile_context>
chip_gen: v6e
topology: v6e:2x2x1
jax: 0.10.0
libtpu: 0.0.40
codegen_flags: <defaults>
</compile_context>

<pallas_src>
import functools
import math

import jax
import jax.numpy as jnp
from jax.experimental import pallas as pl
from jax.experimental.pallas import tpu as pltpu

EPS = 1e-6
LANE = 128                             # preferred vreg lane width
ACC_ROWS = 8                           # f32 accumulator sublane count
TARGET_BLOCK_BYTES = 4 * 1024 * 1024   # per input per pipeline buffer
VMEM_LIMIT_BYTES = 48 * 1024 * 1024    # 2 inputs x 2 buffers x 4 MiB + headroom
                                       # (fits v7x's 64 MiB physical VMEM)


def _round_up(n, m):
    return ((n + m - 1) // m) * m


def _sublane_multiple(dtype):
    # Min second-minor tile: 8 (f32), 16 (bf16/f16), 32 (int8/fp8).
    return max(8, 32 // jnp.dtype(dtype).itemsize)


def _pick_lane_dim(total):
    """Lane (minor) dim for a zero-copy 2-D view of the flattened inputs."""
    if total % LANE == 0:
        return LANE
    # total not divisible by 128: no divisor can be a 128-multiple, so take the
    # largest divisor <= 512 and rely on the full-extent-last-dim BlockSpec
    # rule.  (Pathological prime sizes degrade to lane=1 but stay correct.)
    for d in range(min(total, 512), 0, -1):
        if total % d == 0:
            return d
    return 1


def _charbonnier_sum_kernel(x_ref, y_ref, out_ref, acc_ref, *, eps2, inv_total,
                            rows, row_tile, needs_mask):
    """Accumulates sum(sqrt((x - y)^2 + eps^2)) * inv_total into SMEM."""
    i = pl.program_id(0)
    nb = pl.num_programs(0)

    @pl.when(i == 0)
    def _():
        acc_ref[...] = jnp.zeros_like(acc_ref)

    # Stream native dtype from HBM; cast on the VPU.
    d = x_ref[...].astype(jnp.float32) - y_ref[...].astype(jnp.float32)
    val = jnp.sqrt(d * d + jnp.float32(eps2))
    # TODO(synk): if the bundle dump shows VALU binding on v7x, switch to an
    # rsqrt-based approximate sqrt (accuracy is ample for a loss).

    def _accumulate(v):
        # (row_tile, lane) -> (row_tile//8, 8, lane); axis-0 sum is pure vreg
        # adds on whole (8, lane) tiles -- no cross-lane traffic per step.
        acc_ref[...] += jnp.sum(
            v.reshape(row_tile // ACC_ROWS, ACC_ROWS, v.shape[-1]), axis=0)

    if needs_mask:
        # Only the final block can be partial; keep the steady state mask-free.
        @pl.when(i < nb - 1)
        def _():
            _accumulate(val)

        @pl.when(i == nb - 1)
        def _():
            row_ids = (jax.lax.broadcasted_iota(jnp.int32, val.shape, 0)
                       + i * row_tile)
            _accumulate(jnp.where(row_ids < rows, val, jnp.float32(0.0)))
    else:
        _accumulate(val)

    @pl.when(i == nb - 1)
    def _():
        # Single cross-lane/sublane reduce; normalization folded in.
        out_ref[0, 0] = jnp.sum(acc_ref[...]) * jnp.float32(inv_total)


def charbonnier_loss(x, y, eps=EPS):
    assert x.shape == y.shape, "x and y must have identical shapes"
    total = math.prod(y.shape)
    assert total > 0

    lane = _pick_lane_dim(total)
    rows = total // lane
    # Zero-copy 2-D views of the flattened tensors (no jnp.pad, no slicing).
    x2d = x.reshape(rows, lane)
    y2d = y.reshape(rows, lane)

    sub_mult = max(_sublane_multiple(x.dtype), _sublane_multiple(y.dtype))
    itemsize = max(jnp.dtype(x.dtype).itemsize, jnp.dtype(y.dtype).itemsize)
    max_rows = max(
        sub_mult,
        (TARGET_BLOCK_BYTES // (lane * itemsize)) // sub_mult * sub_mult)
    row_tile = min(max_rows, _round_up(rows, sub_mult))
    num_blocks = pl.cdiv(rows, row_tile)
    needs_mask = (rows % row_tile) != 0

    kernel = functools.partial(
        _charbonnier_sum_kernel,
        eps2=float(eps) ** 2,
        inv_total=1.0 / float(total),
        rows=rows,
        row_tile=row_tile,
        needs_mask=needs_mask,
    )

    bytes_in = total * (jnp.dtype(x.dtype).itemsize
                        + jnp.dtype(y.dtype).itemsize)
    cost = pl.CostEstimate(
        flops=3 * total,            # sub, mul, add
        transcendentals=total,      # sqrt
        bytes_accessed=bytes_in + 4,
    )

    out = pl.pallas_call(
        kernel,
        out_shape=jax.ShapeDtypeStruct((1, 1), jnp.float32),
        grid_spec=pltpu.PrefetchScalarGridSpec(
            num_scalar_prefetch=0,
            grid=(num_blocks,),
            in_specs=[
                pl.BlockSpec((row_tile, lane), lambda i: (i, 0)),
                pl.BlockSpec((row_tile, lane), lambda i: (i, 0)),
            ],
            out_specs=pl.BlockSpec(
                (1, 1), lambda i: (0, 0), memory_space=pltpu.MemorySpace.SMEM
            ),
            scratch_shapes=[pltpu.VMEM((ACC_ROWS, lane), jnp.float32)],
        ),
        compiler_params=pltpu.CompilerParams(
            dimension_semantics=("arbitrary",),
            vmem_limit_bytes=VMEM_LIMIT_BYTES,
        ),
        cost_estimate=cost,
    )(x2d, y2d)

    # TODO(synk): on v7x, split the row range across the 2 TensorCores
    # (leading parallel grid axis, per-core accumulator and output row) for up
    # to ~2x on that chip; kept single-core here for portability/robustness.
    return out[0, 0]


if __name__ == "__main__":
    # CharbonnierLoss has no parameters; eps is a fixed hyperparameter.
    key = jax.random.PRNGKey(0)
    kx, ky = jax.random.split(key)
    shape = (2, 3, 4, 16, 16)  # (b, c, d, h, w)
    x = jax.random.normal(kx, shape, dtype=jnp.float32)
    y = jax.random.normal(ky, shape, dtype=jnp.float32)

    loss = jax.block_until_ready(charbonnier_loss(x, y))

    # Pure-JAX reference check (same math as the PyTorch module).
    ref = jnp.sum(jnp.sqrt((x - y) ** 2 + EPS ** 2)) / math.prod(shape)
    assert jnp.allclose(loss, ref, rtol=1e-5, atol=1e-6), (loss, ref)

    print("KERNEL_OK")
</pallas_src>

<mosaic_0001>
module attributes {stable_mosaic.version = 11 : i64} {
  func.func @_charbonnier_sum_kernel(%arg0: i32, %arg1: memref<48x128xf32, #tpu.memory_space<vmem>>, %arg2: memref<48x128xf32, #tpu.memory_space<vmem>>, %arg3: memref<1x1xf32, #tpu.memory_space<smem>>, %arg4: memref<8x128xf32, #tpu.memory_space<vmem>>) attributes {dimension_semantics = [#tpu.dimension_semantics<arbitrary>], iteration_bounds = array<i64: 1>, scalar_prefetch = 0 : i64, scratch_operands = 1 : i64, tpu.core_type = #tpu.core_type<tc>, window_params = [{transform_indices = @transform_0, window_bounds = array<i64: 48, 128>}, {transform_indices = @transform_1, window_bounds = array<i64: 48, 128>}, {transform_indices = @transform_2, window_bounds = array<i64: 1, 1>}]} {
    %c0_i32 = arith.constant 0 : i32
    %0 = arith.cmpi eq, %arg0, %c0_i32 : i32
    %1 = arith.extui %0 : i1 to i32
    %c0_i32_0 = arith.constant 0 : i32
    %2 = arith.cmpi ne, %1, %c0_i32_0 : i32
    scf.if %2 {
      %cst_11 = arith.constant 0.000000e+00 : f32
      %18 = vector.broadcast %cst_11 : f32 to vector<8x128xf32>
      %c0_12 = arith.constant 0 : index
      %c0_13 = arith.constant 0 : index
      %19 = vector.load %arg4[%c0_12, %c0_13] : memref<8x128xf32, #tpu.memory_space<vmem>>, vector<8x128xf32>
      tpu.vector_store %arg4[%c0_12, %c0_13], %18 {strides = array<i32>} : memref<8x128xf32, #tpu.memory_space<vmem>>, vector<8x128xf32>,
    } else {
    }
    %c0 = arith.constant 0 : index
    %c0_1 = arith.constant 0 : index
    %3 = vector.load %arg1[%c0, %c0_1] : memref<48x128xf32, #tpu.memory_space<vmem>>, vector<48x128xf32>
    %c0_2 = arith.constant 0 : index
    %c0_3 = arith.constant 0 : index
    %4 = vector.load %arg2[%c0_2, %c0_3] : memref<48x128xf32, #tpu.memory_space<vmem>>, vector<48x128xf32>
    %5 = arith.subf %3, %4 : vector<48x128xf32>
    %6 = arith.mulf %5, %5 : vector<48x128xf32>
    %cst = arith.constant 9.99999996E-13 : f32
    %7 = vector.broadcast %cst : f32 to vector<48x128xf32>
    %8 = arith.addf %6, %7 : vector<48x128xf32>
    %9 = math.sqrt %8 : vector<48x128xf32>
    %c0_4 = arith.constant 0 : index
    %c0_5 = arith.constant 0 : index
    %10 = vector.load %arg4[%c0_4, %c0_5] : memref<8x128xf32, #tpu.memory_space<vmem>>, vector<8x128xf32>
    %11 = vector.shape_cast %9 : vector<48x128xf32> to vector<6x8x128xf32>
    %cst_6 = arith.constant dense<0.000000e+00> : vector<8x128xf32>
    %12 = vector.multi_reduction <add>, %11, %cst_6 [0] : vector<6x8x128xf32> to vector<8x128xf32>
    %13 = arith.addf %10, %12 : vector<8x128xf32>
    %c0_7 = arith.constant 0 : index
    %c0_8 = arith.constant 0 : index
    %14 = vector.load %arg4[%c0_7, %c0_8] : memref<8x128xf32, #tpu.memory_space<vmem>>, vector<8x128xf32>
    tpu.vector_store %arg4[%c0_7, %c0_8], %13 {strides = array<i32>} : memref<8x128xf32, #tpu.memory_space<vmem>>, vector<8x128xf32>,
    %c0_i32_9 = arith.constant 0 : i32
    %15 = arith.cmpi eq, %arg0, %c0_i32_9 : i32
    %16 = arith.extui %15 : i1 to i32
    %c0_i32_10 = arith.constant 0 : i32
    %17 = arith.cmpi ne, %16, %c0_i32_10 : i32
    scf.if %17 {
      %c0_11 = arith.constant 0 : index
      %c0_12 = arith.constant 0 : index
      %18 = vector.load %arg4[%c0_11, %c0_12] : memref<8x128xf32, #tpu.memory_space<vmem>>, vector<8x128xf32>
      %19 = vector.shape_cast %18 : vector<8x128xf32> to vector<1x8x128xf32>
      %cst_13 = arith.constant dense<0.000000e+00> : vector<1xf32>
      %20 = vector.multi_reduction <add>, %19, %cst_13 [1, 2] : vector<1x8x128xf32> to vector<1xf32>
      %21 = vector.shape_cast %20 : vector<1xf32> to vector<1x1x1xf32>
      %22 = vector.extract %21[0, 0, 0] : f32 from vector<1x1x1xf32>
      %cst_14 = arith.constant 1.62760422E-4 : f32
      %23 = arith.mulf %22, %cst_14 : f32
      %c0_15 = arith.constant 0 : index
      %c0_16 = arith.constant 0 : index
      %24 = memref.load %arg3[%c0_15, %c0_16] : memref<1x1xf32, #tpu.memory_space<smem>>
      memref.store %23, %arg3[%c0_15, %c0_16] : memref<1x1xf32, #tpu.memory_space<smem>>
    } else {
    }
    return
  }
  func.func @transform_0(%arg0: i32) -> (i32, i32) {
    %c0_i32 = arith.constant 0 : i32
    %c0_i32_0 = arith.constant 0 : i32
    return %arg0, %c0_i32 : i32, i32
  }
  func.func @transform_1(%arg0: i32) -> (i32, i32) {
    %c0_i32 = arith.constant 0 : i32
    %c0_i32_0 = arith.constant 0 : i32
    return %arg0, %c0_i32 : i32, i32
  }
  func.func @transform_2(%arg0: i32) -> (i32, i32) {
    %c0_i32 = arith.constant 0 : i32
    %c0_i32_0 = arith.constant 0 : i32
    %c0_i32_1 = arith.constant 0 : i32
    return %c0_i32, %c0_i32_0 : i32, i32
  }
}

</mosaic_0001>

<llo_original>
// kernel: tpu_custom_call.1
$region0: #{tpu_custom_call.1}
  #allocation0 [shape = 'u32[]', space=smem, size = 0x4, offset = 0x4, fixed_abs, tag = 'smem constant byte address 0x4 - core index']
  #allocation1 [shape = 'u32[144,128]{1,0:T(1,128)}', space=vmem, size = 0x12000, scoped, tag = 'internal scratch']
  #allocation2 [shape = 'f32[8,128]{1,0:T(8,128)}', space=vmem, size = 0x1000, scoped, tag = 'scratch operand']
  %s0 = inlined_call_operand.hbm [shape: f32[48,128], index: 0, kind: input, shape index: {}]
  %s1 = inlined_call_operand.hbm [shape: f32[48,128], index: 1, kind: input, shape index: {}]
  %s2 = inlined_call_operand.hbm [shape: f32[1,1], index: 2, kind: output, shape index: {}]
  %s3 = sld [smem:[#allocation0]]
  $region34: #{tpu_custom_call.1} parent=0
    _
  %s5 = ssub.s32 1, %s3
  %s6 = scalar_select 0, %s5, %s3
  $region1: #{tpu_custom_call.1} parent=0
    #allocation3 [shape = 'u8[24576]{0}', space=vmem, size = 0x6000, scoped, tag = 'input window, operand 0, single buffered']
    #allocation4 [shape = 's32[1]{0}', space=sflag, size = 0x4, scoped, tag = 'scoped memory for tpu_custom_call.1']
    #allocation5 [shape = 's32[1]{0}', space=sflag, size = 0x4, scoped, tag = 'scoped memory for tpu_custom_call.1']
    #allocation6 [shape = 'u8[24576]{0}', space=vmem, size = 0x6000, scoped, tag = 'input window, operand 1, single buffered']
    #allocation7 [shape = 's32[1]{0}', space=sflag, size = 0x4, scoped, tag = 'scoped memory for tpu_custom_call.1']
    #allocation8 [shape = 'u8[512]{0}', space=smem, size = 0x200, scoped, tag = 'output window, operand 0, single buffered']
    %7 = vsyncpa [#allocation4], 0
    %8 = vsyncpa [#allocation7], 0
    %9 = vsyncpa [#allocation5], 0
    // Predicated region
    $region2: #{tpu_custom_call.1} parent=1 // pred_check
      _
    $region3: #{tpu_custom_call.1} parent=1 // pred_check_branch
      %11 = sbr.rel (0) target = $region5
    $region4: #{tpu_custom_call.1} parent=1 // pred_region
      %s13 = ssub.s32 768, 768
      %14 = vsyncadd [#allocation4], %s13
      %s15 = sshll.u32 [#allocation3], 4
      %s16 = int_to_ptr.vmem [resolvable:$true] %s15
      %21 = dma.hbm_to_vmem [thread:$0]  %s0, 768, %s16, [#allocation4], 128, 128, 8
    $region5: #{tpu_custom_call.1} parent=1 // pred_fallthru
      _
    // Predicated region
    $region6: #{tpu_custom_call.1} parent=1 // pred_check
      _
    $region7: #{tpu_custom_call.1} parent=1 // pred_check_branch
      %23 = sbr.rel (0) target = $region9
    $region8: #{tpu_custom_call.1} parent=1 // pred_region
      %s25 = ssub.s32 768, 768
      %26 = vsyncadd [#allocation7], %s25
      %s27 = sshll.u32 [#allocation6], 4
      %s28 = int_to_ptr.vmem [resolvable:$true] %s27
      %33 = dma.hbm_to_vmem [thread:$0]  %s1, 768, %s28, [#allocation7], 128, 128, 8
    $region9: #{tpu_custom_call.1} parent=1 // pred_fallthru
      _
    // Predicated region
    $region10: #{tpu_custom_call.1} parent=1 // pred_check
      _
    $region11: #{tpu_custom_call.1} parent=1 // pred_check_branch
      %35 = sbr.rel (0) target = $region13
    $region12: #{tpu_custom_call.1} parent=1 // pred_region
      %36 = dma.done [#allocation4], 768
    $region13: #{tpu_custom_call.1} parent=1 // pred_fallthru
      _
    // Predicated region
    $region14: #{tpu_custom_call.1} parent=1 // pred_check
      _
    $region15: #{tpu_custom_call.1} parent=1 // pred_check_branch
      %38 = sbr.rel (0) target = $region17
    $region16: #{tpu_custom_call.1} parent=1 // pred_region
      %39 = dma.done [#allocation7], 768
    $region17: #{tpu_custom_call.1} parent=1 // pred_fallthru
      _
    %p40 = scmp.eq.s32.totalorder 0, 0
    // Predicated region
    $region18: #{tpu_custom_call.1} parent=1 // pred_check
      %p41 = pneg %p40
    $region19: #{tpu_custom_call.1} parent=1 // pred_check_branch
      %43 = sbr.rel (%p41) target = $region21
    $region20: #{tpu_custom_call.1} parent=1 // pred_region
      %44 = vst [vmem:[#allocation2] sm:$0xff] 0.0
    $region21: #{tpu_custom_call.1} parent=1 // pred_fallthru
      _
    %v45 = vld [vmem:[#allocation3] sm:$0xff]
    %v46 = vld [vmem:[#allocation3 + $0x8] sm:$0xff]
    %v47 = vld [vmem:[#allocation3 + $0x10] sm:$0xff]
    %v48 = vld [vmem:[#allocation3 + $0x18] sm:$0xff]
    %v49 = vld [vmem:[#allocation3 + $0x20] sm:$0xff]
    %v50 = vld [vmem:[#allocation3 + $0x28] sm:$0xff]
    %v51 = vld [vmem:[#allocation6] sm:$0xff]
    %v52 = vld [vmem:[#allocation6 + $0x8] sm:$0xff]
    %v53 = vld [vmem:[#allocation6 + $0x10] sm:$0xff]
    %v54 = vld [vmem:[#allocation6 + $0x18] sm:$0xff]
    %v55 = vld [vmem:[#allocation6 + $0x20] sm:$0xff]
    %v56 = vld [vmem:[#allocation6 + $0x28] sm:$0xff]
    %v57 = vsub.f32 %v45, %v51
    %v58 = vsub.f32 %v46, %v52
    %v59 = vsub.f32 %v47, %v53
    %v60 = vsub.f32 %v48, %v54
    %v61 = vsub.f32 %v49, %v55
    %v62 = vsub.f32 %v50, %v56
    %v63 = vmul.f32 %v57, %v57
    %v64 = vmul.f32 %v58, %v58
    %v65 = vmul.f32 %v59, %v59
    %v66 = vmul.f32 %v60, %v60
    %v67 = vmul.f32 %v61, %v61
    %v68 = vmul.f32 %v62, %v62
    %v69 = vadd.f32 %v63, 1e-12
    %v70 = vadd.f32 %v64, 1e-12
    %v71 = vadd.f32 %v65, 1e-12
    %v72 = vadd.f32 %v66, 1e-12
    %v73 = vadd.f32 %v67, 1e-12
    %v74 = vadd.f32 %v68, 1e-12
    %v75 = vrsqrt.pop %v69
    %v76 = vmul.f32 %v69, %v75
    %vm77 = vcmp.eq.f32.partialorder %v69, inf
    %v78 = vsel %vm77, %v69, %v76
    %vm79 = vcmp.eq.f32.partialorder %v69, 0.0
    %v80 = vand.u32 %v69, 2147483648
    %v81 = vsel %vm79, %v80, %v78
    %v82 = vrsqrt.pop %v70
    %v83 = vmul.f32 %v70, %v82
    %vm84 = vcmp.eq.f32.partialorder %v70, inf
    %v85 = vsel %vm84, %v70, %v83
    %vm86 = vcmp.eq.f32.partialorder %v70, 0.0
    %v87 = vand.u32 %v70, 2147483648
    %v88 = vsel %vm86, %v87, %v85
    %v89 = vrsqrt.pop %v71
    %v90 = vmul.f32 %v71, %v89
    %vm91 = vcmp.eq.f32.partialorder %v71, inf
    %v92 = vsel %vm91, %v71, %v90
    %vm93 = vcmp.eq.f32.partialorder %v71, 0.0
    %v94 = vand.u32 %v71, 2147483648
    %v95 = vsel %vm93, %v94, %v92
    %v96 = vrsqrt.pop %v72
    %v97 = vmul.f32 %v72, %v96
    %vm98 = vcmp.eq.f32.partialorder %v72, inf
    %v99 = vsel %vm98, %v72, %v97
    %vm100 = vcmp.eq.f32.partialorder %v72, 0.0
    %v101 = vand.u32 %v72, 2147483648
    %v102 = vsel %vm100, %v101, %v99
    %v103 = vrsqrt.pop %v73
    %v104 = vmul.f32 %v73, %v103
    %vm105 = vcmp.eq.f32.partialorder %v73, inf
    %v106 = vsel %vm105, %v73, %v104
    %vm107 = vcmp.eq.f32.partialorder %v73, 0.0
    %v108 = vand.u32 %v73, 2147483648
    %v109 = vsel %vm107, %v108, %v106
    %v110 = vrsqrt.pop %v74
    %v111 = vmul.f32 %v74, %v110
    %vm112 = vcmp.eq.f32.partialorder %v74, inf
    %v113 = vsel %vm112, %v74, %v111
    %vm114 = vcmp.eq.f32.partialorder %v74, 0.0
    %v115 = vand.u32 %v74, 2147483648
    %v116 = vsel %vm114, %v115, %v113
    %v117 = vld [vmem:[#allocation2] sm:$0xff]
    %v118 = vadd.f32 %v81, %v88
    %v119 = vadd.f32 %v118, %v95
    %v120 = vadd.f32 %v119, %v102
    %v121 = vadd.f32 %v120, %v109
    %v122 = vadd.f32 %v121, %v116
    %v123 = vadd.f32 %v117, %v122
    %124 = vst [vmem:[#allocation2] sm:$0xff] %v123
    // Predicated region
    $region22: #{tpu_custom_call.1} parent=1 // pred_check
      %p125 = pneg %p40
    $region23: #{tpu_custom_call.1} parent=1 // pred_check_branch
      %127 = sbr.rel (%p125) target = $region25
    $region24: #{tpu_custom_call.1} parent=1 // pred_region
      %v128 = vld [vmem:[#allocation2] sm:$0xff]
      %129 = vadd.xlane.f32.xlu0 %v128
      %v130 = vpop.xlane.xlu0 %129
      %v131 = vrot.slane %v130, 4
      %v132 = vadd.f32 %v130, %v131
      %v133 = vrot.slane %v132, 2
      %v134 = vadd.f32 %v132, %v133
      %v135 = vrot.slane %v134, 1
      %v136 = vadd.f32 %v134, %v135
      %s137 = vtos %v136
      %s138 = smul.f32 %s137, 0.00016276042
      %s139 = scalar_lea.smem [#allocation8], 0
      %140 = sst [smem:[%s139]] %s138
    $region25: #{tpu_custom_call.1} parent=1 // pred_fallthru
      _
    // Predicated region
    $region26: #{tpu_custom_call.1} parent=1 // pred_check
      _
    $region27: #{tpu_custom_call.1} parent=1 // pred_check_branch
      %142 = sbr.rel (0) target = $region29
    $region28: #{tpu_custom_call.1} parent=1 // pred_region
      %s144 = ssub.s32 16, 16
      %145 = vsyncadd [#allocation5], %s144
      %148 = dma.smem_to_hbm [#allocation8], 16, %s2, [#allocation5]
    $region29: #{tpu_custom_call.1} parent=1 // pred_fallthru
      _
    // Predicated region
    $region30: #{tpu_custom_call.1} parent=1 // pred_check
      _
    $region31: #{tpu_custom_call.1} parent=1 // pred_check_branch
      %150 = sbr.rel (0) target = $region33
    $region32: #{tpu_custom_call.1} parent=1 // pred_region
      %151 = dma.done [#allocation5], 16
    $region33: #{tpu_custom_call.1} parent=1 // pred_fallthru
      _
    %152 = sfence
    %153 = vsyncpa [#allocation4], 1
    %154 = vsyncpa [#allocation7], 1
    %155 = vsyncpa [#allocation5], 1

</llo_original>
